<compile_context>
chip_gen: v5e
topology: v5e:2x2
jax: 0.10.0
libtpu: 0.0.40
codegen_flags: <defaults>
</compile_context>

<pallas_src>
import functools

import jax
import jax.numpy as jnp
from jax import lax
from jax.experimental import pallas as pl
from jax.experimental.pallas import tpu as pltpu


LANE = 128          # row-tile granule: rows live on the lane dimension


# --------------------------------------------------------------------------
# kernel
# --------------------------------------------------------------------------
def _mlp_kernel(num_blocks,
                x_ref, w_in_ref, b_in_ref,
                w1s_ref, b1s_ref, w2s_ref, b2s_ref,
                w_out_ref, b_out_ref,
                o_ref):
    """All activations are (features, TILE): features on sublanes, rows on lanes."""
    mm_dtype = w_in_ref.dtype                               # bf16 or f32
    x = x_ref[...].astype(mm_dtype)                         # (E, TILE), cast in-kernel

    # input projection (no activation, per nn.Sequential ordering)
    h = jnp.dot(w_in_ref[...], x,
                preferred_element_type=jnp.float32) + b_in_ref[...]   # (H, TILE) f32

    def resnet_block(b, h):
        residual = h
        t = jnp.dot(w1s_ref[b], h.astype(mm_dtype),
                    preferred_element_type=jnp.float32) + b1s_ref[b]
        t = jnp.maximum(t, 0.0)
        h = jnp.dot(w2s_ref[b], t.astype(mm_dtype),
                    preferred_element_type=jnp.float32) + b2s_ref[b] + residual
        return jnp.maximum(h, 0.0)

    if num_blocks <= 4:
        # small static count: unrolled python loop
        for b in range(num_blocks):
            h = resnet_block(b, h)
    else:
        # deep stacks: bound live ranges / code size with a real loop
        h = lax.fori_loop(0, num_blocks, resnet_block, h)

    # output head: (1, H) @ (H, TILE) -> (1, TILE), already lane-dense
    y = jnp.dot(w_out_ref[...], h.astype(mm_dtype),
                preferred_element_type=jnp.float32) + b_out_ref[...]
    o_ref[...] = jnp.maximum(y, 0.0).astype(o_ref.dtype)


# --------------------------------------------------------------------------
# wrapper
# --------------------------------------------------------------------------
def _round_up(n, m):
    return ((n + m - 1) // m) * m


def _choose_tile(n, requested):
    """Row tile: multiple of LANE (rows sit on lanes), <= padded N; nudged toward
    an even (>=2) number of grid steps so v7x's two TensorCores split evenly."""
    n_lanes = _round_up(max(n, 1), LANE)
    t = max(LANE, min(_round_up(requested, LANE), n_lanes))
    num = pl.cdiv(n_lanes, t)
    if num == 1 and n_lanes >= 2 * LANE:
        t = _round_up(n_lanes // 2, LANE)                   # exactly 2 tiles
    elif num % 2 == 1 and 1 < num < 8:
        t_even = max(LANE, _round_up(pl.cdiv(n_lanes, num + 1), LANE))
        if pl.cdiv(n_lanes, t_even) % 2 == 0:
            t = t_even
    return t


def _weight_spec(block_shape, index_map, single_buffer):
    # Constant index map -> DMA'd once & resident; Buffered(1) avoids an
    # unnecessary second buffer (matters for big weight stacks on v7x VMEM).
    if single_buffer:
        return pl.BlockSpec(block_shape, index_map, pipeline_mode=pl.Buffered(1))
    return pl.BlockSpec(block_shape, index_map)


def time_regression_pallas(x, params, *, tile_rows=512, use_bf16=True):
    """x: (..., embed_dim) float32. Returns (..., 1) float32."""
    (w_in, b_in, w1s, b1s, w2s, b2s, w_out, b_out) = params
    lead_shape = x.shape[:-1]
    E = x.shape[-1]
    H = w_in.shape[0]
    nb = int(w1s.shape[0])

    x2 = x.reshape(-1, E).astype(jnp.float32)   # stays f32: bf16 cast happens in-kernel
    N = x2.shape[0]

    tile = _choose_tile(N, tile_rows)
    n_pad = _round_up(N, tile)
    if n_pad != N:
        x2 = jnp.pad(x2, ((0, n_pad - N), (0, 0)))
    x_t = x2.T                                   # (E, n_pad): rows on lanes
    num_tiles = n_pad // tile

    # bf16 matmul operands (MXU-native), f32 accumulation; biases stay f32.
    mm_dtype = jnp.bfloat16 if use_bf16 else jnp.float32
    w_in_c = w_in.astype(mm_dtype)
    w1s_c = w1s.astype(mm_dtype)
    w2s_c = w2s.astype(mm_dtype)
    w_out_c = w_out.astype(mm_dtype)

    kernel = functools.partial(_mlp_kernel, nb)
    const2 = lambda i: (0, 0)
    const3 = lambda i: (0, 0, 0)

    flops = int(2 * n_pad * (E * H + 2 * nb * H * H + H))
    weight_bytes = sum(int(a.size) * a.dtype.itemsize for a in
                       (w_in_c, b_in, w1s_c, b1s, w2s_c, b2s, w_out_c, b_out))
    bytes_accessed = int(n_pad * E * 4 + weight_bytes + n_pad * 4)

    # VMEM budget: double-buffered x/out tiles + resident weights, with slack;
    # capped below v7x's 64 MiB physical VMEM.
    vmem_need = 2 * (E * tile * 4) + 2 * (tile * 4) + 2 * weight_bytes
    vmem_limit = int(min(max(4 * vmem_need, 8 << 20), 48 << 20))

    def _forward(single_buffer_weights):
        return pl.pallas_call(
            kernel,
            out_shape=jax.ShapeDtypeStruct((1, n_pad), jnp.float32),
            grid=(num_tiles,),
            in_specs=[
                pl.BlockSpec((E, tile), lambda i: (0, i)),                    # x tile (streams)
                _weight_spec((H, E), const2, single_buffer_weights),          # W_in
                _weight_spec((H, 1), const2, single_buffer_weights),          # b_in
                _weight_spec((nb, H, H), const3, single_buffer_weights),      # W1 stack
                _weight_spec((nb, H, 1), const3, single_buffer_weights),      # b1 stack
                _weight_spec((nb, H, H), const3, single_buffer_weights),      # W2 stack
                _weight_spec((nb, H, 1), const3, single_buffer_weights),      # b2 stack
                _weight_spec((1, H), const2, single_buffer_weights),          # W_out
                _weight_spec((1, 1), const2, single_buffer_weights),          # b_out
            ],
            out_specs=pl.BlockSpec((1, tile), lambda i: (0, i)),              # lane-dense
            compiler_params=pltpu.CompilerParams(
                dimension_semantics=("parallel",),
                vmem_limit_bytes=vmem_limit),
            cost_estimate=pl.CostEstimate(
                flops=flops, transcendentals=0, bytes_accessed=bytes_accessed),
        )(x_t, w_in_c, b_in, w1s_c, b1s, w2s_c, b2s, w_out_c, b_out)

    try:
        out = _forward(single_buffer_weights=True)
    except Exception:
        # TODO(synk): drop fallback once pl.Buffered(1) single-buffering is
        # guaranteed on all Pallas builds (perf-only; semantics identical).
        out = _forward(single_buffer_weights=False)

    y = out[0, :N]
    return y.reshape(lead_shape + (1,))


# --------------------------------------------------------------------------
# params + pure-JAX reference
# --------------------------------------------------------------------------
def init_params(key, num_blocks, hidden_units, embed_dim):
    """nn.Linear-style init (uniform +-1/sqrt(fan_in)). Weights kept in PyTorch
    (out, in) layout; biases stored (out, 1) so they lane-broadcast in-kernel."""
    keys = jax.random.split(key, 2 + 2 * num_blocks)
    ki = iter(keys)

    def linear(k, fan_in, fan_out):
        kw, kb = jax.random.split(k)
        bound = 1.0 / jnp.sqrt(jnp.float32(fan_in))
        w = jax.random.uniform(kw, (fan_out, fan_in), jnp.float32, -bound, bound)
        b = jax.random.uniform(kb, (fan_out, 1), jnp.float32, -bound, bound)
        return w, b

    w_in, b_in = linear(next(ki), embed_dim, hidden_units)

    w1s, b1s, w2s, b2s = [], [], [], []
    for _ in range(num_blocks):
        w1, b1 = linear(next(ki), hidden_units, hidden_units)
        w2, b2 = linear(next(ki), hidden_units, hidden_units)
        w1s.append(w1); b1s.append(b1); w2s.append(w2); b2s.append(b2)
    w1s = jnp.stack(w1s); b1s = jnp.stack(b1s)
    w2s = jnp.stack(w2s); b2s = jnp.stack(b2s)

    w_out, b_out = linear(next(ki), hidden_units, 1)       # (1, H), (1, 1)

    return (w_in, b_in, w1s, b1s, w2s, b2s, w_out, b_out)


def time_regression_ref(x2d, params):
    (w_in, b_in, w1s, b1s, w2s, b2s, w_out, b_out) = params
    h = x2d @ w_in.T + b_in[:, 0]
    for b in range(w1s.shape[0]):
        t = jnp.maximum(h @ w1s[b].T + b1s[b, :, 0], 0.0)
        h = jnp.maximum(t @ w2s[b].T + b2s[b, :, 0] + h, 0.0)
    return jnp.maximum(h @ w_out.T + b_out[:, 0], 0.0)


# --------------------------------------------------------------------------
if __name__ == "__main__":
    num_blocks = 2
    hidden_units = 32
    embed_dim = 32
    batch, seq = 2, 24            # N = 48 -> one 128-row tile (padded)

    key = jax.random.PRNGKey(0)
    kx, kp, kodd = jax.random.split(key, 3)

    x = jax.random.normal(kx, (batch, seq, embed_dim), jnp.float32)
    params = init_params(kp, num_blocks, hidden_units, embed_dim)

    ref = time_regression_ref(x.reshape(-1, embed_dim), params).reshape(batch, seq, 1)

    # exact f32 path: validates kernel structure tightly
    out_f32 = jax.block_until_ready(
        time_regression_pallas(x, params, use_bf16=False))
    assert out_f32.shape == (batch, seq, 1)
    assert jnp.allclose(out_f32, ref, atol=2e-5, rtol=2e-5), "f32 mismatch"

    # default bf16-matmul path: relaxed tolerance vs f32 reference
    out_bf16 = jax.block_until_ready(time_regression_pallas(x, params))
    assert out_bf16.shape == (batch, seq, 1)
    assert jnp.allclose(out_bf16, ref, atol=5e-2, rtol=5e-2), "bf16 mismatch"

    # ragged row count + multi-tile grid (exercises padding / slicing / grid>1)
    x_odd = jax.random.normal(kodd, (257, embed_dim), jnp.float32)
    out_odd = jax.block_until_ready(
        time_regression_pallas(x_odd, params, tile_rows=128, use_bf16=False))
    ref_odd = time_regression_ref(x_odd, params)
    assert out_odd.shape == (257, 1)
    assert jnp.allclose(out_odd, ref_odd, atol=2e-5, rtol=2e-5), "ragged mismatch"

    print("KERNEL_OK")
</pallas_src>

<mosaic_0001>
module attributes {stable_mosaic.version = 11 : i64} {
  func.func @_mlp_kernel(%arg0: i32, %arg1: memref<32x128xf32, #tpu.memory_space<vmem>>, %arg2: memref<32x32xf32, #tpu.memory_space<vmem>>, %arg3: memref<32x1xf32, #tpu.memory_space<vmem>>, %arg4: memref<2x32x32xf32, #tpu.memory_space<vmem>>, %arg5: memref<2x32x1xf32, #tpu.memory_space<vmem>>, %arg6: memref<2x32x32xf32, #tpu.memory_space<vmem>>, %arg7: memref<2x32x1xf32, #tpu.memory_space<vmem>>, %arg8: memref<1x32xf32, #tpu.memory_space<vmem>>, %arg9: memref<1x1xf32, #tpu.memory_space<vmem>>, %arg10: memref<1x128xf32, #tpu.memory_space<vmem>>) attributes {dimension_semantics = [#tpu.dimension_semantics<parallel>], iteration_bounds = array<i64: 1>, scalar_prefetch = 0 : i64, scratch_operands = 0 : i64, tpu.core_type = #tpu.core_type<tc>, window_params = [{transform_indices = @transform_0, window_bounds = array<i64: 32, 128>}, {pipeline_mode = #tpu.pipeline_mode<synchronous>, transform_indices = @transform_1, window_bounds = array<i64: 32, 32>}, {pipeline_mode = #tpu.pipeline_mode<synchronous>, transform_indices = @transform_2, window_bounds = array<i64: 32, 1>}, {pipeline_mode = #tpu.pipeline_mode<synchronous>, transform_indices = @transform_3, window_bounds = array<i64: 2, 32, 32>}, {pipeline_mode = #tpu.pipeline_mode<synchronous>, transform_indices = @transform_4, window_bounds = array<i64: 2, 32, 1>}, {pipeline_mode = #tpu.pipeline_mode<synchronous>, transform_indices = @transform_5, window_bounds = array<i64: 2, 32, 32>}, {pipeline_mode = #tpu.pipeline_mode<synchronous>, transform_indices = @transform_6, window_bounds = array<i64: 2, 32, 1>}, {pipeline_mode = #tpu.pipeline_mode<synchronous>, transform_indices = @transform_7, window_bounds = array<i64: 1, 32>}, {pipeline_mode = #tpu.pipeline_mode<synchronous>, transform_indices = @transform_8, window_bounds = array<i64: 1, 1>}, {transform_indices = @transform_9, window_bounds = array<i64: 1, 128>}]} {
    %c0 = arith.constant 0 : index
    %c0_0 = arith.constant 0 : index
    %0 = vector.load %arg1[%c0, %c0_0] : memref<32x128xf32, #tpu.memory_space<vmem>>, vector<32x128xf32>
    %c0_1 = arith.constant 0 : index
    %c0_2 = arith.constant 0 : index
    %1 = vector.load %arg2[%c0_1, %c0_2] : memref<32x32xf32, #tpu.memory_space<vmem>>, vector<32x32xf32>
    %cst = arith.constant dense<0.000000e+00> : vector<32x128xf32>
    %2 = tpu.matmul %1, %0, %cst {dimension_numbers = #tpu.dot_dimension_numbers<[1], [0], [0], [1], [0, 0, 1, 1], [], []>} : vector<32x32xf32>, vector<32x128xf32>, vector<32x128xf32> -> vector<32x128xf32>
    %c0_3 = arith.constant 0 : index
    %c0_4 = arith.constant 0 : index
    %3 = vector.load %arg3[%c0_3, %c0_4] : memref<32x1xf32, #tpu.memory_space<vmem>>, vector<32x1xf32>
    %4 = vector.broadcast %3 : vector<32x1xf32> to vector<32x128xf32>
    %5 = arith.addf %2, %4 : vector<32x128xf32>
    %c0_5 = arith.constant 0 : index
    %c0_6 = arith.constant 0 : index
    %c0_7 = arith.constant 0 : index
    %6 = vector.load %arg4[%c0_5, %c0_6, %c0_7] : memref<2x32x32xf32, #tpu.memory_space<vmem>>, vector<1x32x32xf32>
    %7 = vector.shape_cast %6 : vector<1x32x32xf32> to vector<32x32xf32>
    %cst_8 = arith.constant dense<0.000000e+00> : vector<32x128xf32>
    %8 = tpu.matmul %7, %5, %cst_8 {dimension_numbers = #tpu.dot_dimension_numbers<[1], [0], [0], [1], [0, 0, 1, 1], [], []>} : vector<32x32xf32>, vector<32x128xf32>, vector<32x128xf32> -> vector<32x128xf32>
    %c0_9 = arith.constant 0 : index
    %c0_10 = arith.constant 0 : index
    %c0_11 = arith.constant 0 : index
    %9 = vector.load %arg5[%c0_9, %c0_10, %c0_11] : memref<2x32x1xf32, #tpu.memory_space<vmem>>, vector<1x32x1xf32>
    %10 = vector.shape_cast %9 : vector<1x32x1xf32> to vector<32x1xf32>
    %11 = vector.broadcast %10 : vector<32x1xf32> to vector<32x128xf32>
    %12 = arith.addf %8, %11 : vector<32x128xf32>
    %cst_12 = arith.constant 0.000000e+00 : f32
    %13 = vector.broadcast %cst_12 : f32 to vector<32x128xf32>
    %14 = arith.maximumf %12, %13 : vector<32x128xf32>
    %c0_13 = arith.constant 0 : index
    %c0_14 = arith.constant 0 : index
    %c0_15 = arith.constant 0 : index
    %15 = vector.load %arg6[%c0_13, %c0_14, %c0_15] : memref<2x32x32xf32, #tpu.memory_space<vmem>>, vector<1x32x32xf32>
    %16 = vector.shape_cast %15 : vector<1x32x32xf32> to vector<32x32xf32>
    %cst_16 = arith.constant dense<0.000000e+00> : vector<32x128xf32>
    %17 = tpu.matmul %16, %14, %cst_16 {dimension_numbers = #tpu.dot_dimension_numbers<[1], [0], [0], [1], [0, 0, 1, 1], [], []>} : vector<32x32xf32>, vector<32x128xf32>, vector<32x128xf32> -> vector<32x128xf32>
    %c0_17 = arith.constant 0 : index
    %c0_18 = arith.constant 0 : index
    %c0_19 = arith.constant 0 : index
    %18 = vector.load %arg7[%c0_17, %c0_18, %c0_19] : memref<2x32x1xf32, #tpu.memory_space<vmem>>, vector<1x32x1xf32>
    %19 = vector.shape_cast %18 : vector<1x32x1xf32> to vector<32x1xf32>
    %20 = vector.broadcast %19 : vector<32x1xf32> to vector<32x128xf32>
    %21 = arith.addf %17, %20 : vector<32x128xf32>
    %22 = arith.addf %21, %5 : vector<32x128xf32>
    %cst_20 = arith.constant 0.000000e+00 : f32
    %23 = vector.broadcast %cst_20 : f32 to vector<32x128xf32>
    %24 = arith.maximumf %22, %23 : vector<32x128xf32>
    %c1 = arith.constant 1 : index
    %c0_21 = arith.constant 0 : index
    %c0_22 = arith.constant 0 : index
    %25 = vector.load %arg4[%c1, %c0_21, %c0_22] : memref<2x32x32xf32, #tpu.memory_space<vmem>>, vector<1x32x32xf32>
    %26 = vector.shape_cast %25 : vector<1x32x32xf32> to vector<32x32xf32>
    %cst_23 = arith.constant dense<0.000000e+00> : vector<32x128xf32>
    %27 = tpu.matmul %26, %24, %cst_23 {dimension_numbers = #tpu.dot_dimension_numbers<[1], [0], [0], [1], [0, 0, 1, 1], [], []>} : vector<32x32xf32>, vector<32x128xf32>, vector<32x128xf32> -> vector<32x128xf32>
    %c1_24 = arith.constant 1 : index
    %c0_25 = arith.constant 0 : index
    %c0_26 = arith.constant 0 : index
    %28 = vector.load %arg5[%c1_24, %c0_25, %c0_26] : memref<2x32x1xf32, #tpu.memory_space<vmem>>, vector<1x32x1xf32>
    %29 = vector.shape_cast %28 : vector<1x32x1xf32> to vector<32x1xf32>
    %30 = vector.broadcast %29 : vector<32x1xf32> to vector<32x128xf32>
    %31 = arith.addf %27, %30 : vector<32x128xf32>
    %cst_27 = arith.constant 0.000000e+00 : f32
    %32 = vector.broadcast %cst_27 : f32 to vector<32x128xf32>
    %33 = arith.maximumf %31, %32 : vector<32x128xf32>
    %c1_28 = arith.constant 1 : index
    %c0_29 = arith.constant 0 : index
    %c0_30 = arith.constant 0 : index
    %34 = vector.load %arg6[%c1_28, %c0_29, %c0_30] : memref<2x32x32xf32, #tpu.memory_space<vmem>>, vector<1x32x32xf32>
    %35 = vector.shape_cast %34 : vector<1x32x32xf32> to vector<32x32xf32>
    %cst_31 = arith.constant dense<0.000000e+00> : vector<32x128xf32>
    %36 = tpu.matmul %35, %33, %cst_31 {dimension_numbers = #tpu.dot_dimension_numbers<[1], [0], [0], [1], [0, 0, 1, 1], [], []>} : vector<32x32xf32>, vector<32x128xf32>, vector<32x128xf32> -> vector<32x128xf32>
    %c1_32 = arith.constant 1 : index
    %c0_33 = arith.constant 0 : index
    %c0_34 = arith.constant 0 : index
    %37 = vector.load %arg7[%c1_32, %c0_33, %c0_34] : memref<2x32x1xf32, #tpu.memory_space<vmem>>, vector<1x32x1xf32>
    %38 = vector.shape_cast %37 : vector<1x32x1xf32> to vector<32x1xf32>
    %39 = vector.broadcast %38 : vector<32x1xf32> to vector<32x128xf32>
    %40 = arith.addf %36, %39 : vector<32x128xf32>
    %41 = arith.addf %40, %24 : vector<32x128xf32>
    %cst_35 = arith.constant 0.000000e+00 : f32
    %42 = vector.broadcast %cst_35 : f32 to vector<32x128xf32>
    %43 = arith.maximumf %41, %42 : vector<32x128xf32>
    %c0_36 = arith.constant 0 : index
    %c0_37 = arith.constant 0 : index
    %44 = vector.load %arg8[%c0_36, %c0_37] : memref<1x32xf32, #tpu.memory_space<vmem>>, vector<1x32xf32>
    %cst_38 = arith.constant dense<0.000000e+00> : vector<1x128xf32>
    %45 = tpu.matmul %44, %43, %cst_38 {dimension_numbers = #tpu.dot_dimension_numbers<[1], [0], [0], [1], [0, 0, 1, 1], [], []>} : vector<1x32xf32>, vector<32x128xf32>, vector<1x128xf32> -> vector<1x128xf32>
    %c0_39 = arith.constant 0 : index
    %c0_40 = arith.constant 0 : index
    %46 = vector.load %arg9[%c0_39, %c0_40] : memref<1x1xf32, #tpu.memory_space<vmem>>, vector<1x1xf32>
    %47 = vector.broadcast %46 : vector<1x1xf32> to vector<1x128xf32>
    %48 = arith.addf %45, %47 : vector<1x128xf32>
    %cst_41 = arith.constant 0.000000e+00 : f32
    %49 = vector.broadcast %cst_41 : f32 to vector<1x128xf32>
    %50 = arith.maximumf %48, %49 : vector<1x128xf32>
    %c0_42 = arith.constant 0 : index
    %c0_43 = arith.constant 0 : index
    %51 = vector.load %arg10[%c0_42, %c0_43] : memref<1x128xf32, #tpu.memory_space<vmem>>, vector<1x128xf32>
    tpu.vector_store %arg10[%c0_42, %c0_43], %50 {strides = array<i32>} : memref<1x128xf32, #tpu.memory_space<vmem>>, vector<1x128xf32>,
    return
  }
  func.func @transform_0(%arg0: i32) -> (i32, i32) {
    %c0_i32 = arith.constant 0 : i32
    %c0_i32_0 = arith.constant 0 : i32
    return %c0_i32, %arg0 : i32, i32
  }
  func.func @transform_1(%arg0: i32) -> (i32, i32) {
    %c0_i32 = arith.constant 0 : i32
    %c0_i32_0 = arith.constant 0 : i32
    %c0_i32_1 = arith.constant 0 : i32
    return %c0_i32, %c0_i32_0 : i32, i32
  }
  func.func @transform_2(%arg0: i32) -> (i32, i32) {
    %c0_i32 = arith.constant 0 : i32
    %c0_i32_0 = arith.constant 0 : i32
    %c0_i32_1 = arith.constant 0 : i32
    return %c0_i32, %c0_i32_0 : i32, i32
  }
  func.func @transform_3(%arg0: i32) -> (i32, i32, i32) {
    %c0_i32 = arith.constant 0 : i32
    %c0_i32_0 = arith.constant 0 : i32
    %c0_i32_1 = arith.constant 0 : i32
    %c0_i32_2 = arith.constant 0 : i32
    return %c0_i32, %c0_i32_0, %c0_i32_1 : i32, i32, i32
  }
  func.func @transform_4(%arg0: i32) -> (i32, i32, i32) {
    %c0_i32 = arith.constant 0 : i32
    %c0_i32_0 = arith.constant 0 : i32
    %c0_i32_1 = arith.constant 0 : i32
    %c0_i32_2 = arith.constant 0 : i32
    return %c0_i32, %c0_i32_0, %c0_i32_1 : i32, i32, i32
  }
  func.func @transform_5(%arg0: i32) -> (i32, i32, i32) {
    %c0_i32 = arith.constant 0 : i32
    %c0_i32_0 = arith.constant 0 : i32
    %c0_i32_1 = arith.constant 0 : i32
    %c0_i32_2 = arith.constant 0 : i32
    return %c0_i32, %c0_i32_0, %c0_i32_1 : i32, i32, i32
  }
  func.func @transform_6(%arg0: i32) -> (i32, i32, i32) {
    %c0_i32 = arith.constant 0 : i32
    %c0_i32_0 = arith.constant 0 : i32
    %c0_i32_1 = arith.constant 0 : i32
    %c0_i32_2 = arith.constant 0 : i32
    return %c0_i32, %c0_i32_0, %c0_i32_1 : i32, i32, i32
  }
  func.func @transform_7(%arg0: i32) -> (i32, i32) {
    %c0_i32 = arith.constant 0 : i32
    %c0_i32_0 = arith.constant 0 : i32
    %c0_i32_1 = arith.constant 0 : i32
    return %c0_i32, %c0_i32_0 : i32, i32
  }
  func.func @transform_8(%arg0: i32) -> (i32, i32) {
    %c0_i32 = arith.constant 0 : i32
    %c0_i32_0 = arith.constant 0 : i32
    %c0_i32_1 = arith.constant 0 : i32
    return %c0_i32, %c0_i32_0 : i32, i32
  }
  func.func @transform_9(%arg0: i32) -> (i32, i32) {
    %c0_i32 = arith.constant 0 : i32
    %c0_i32_0 = arith.constant 0 : i32
    return %c0_i32, %arg0 : i32, i32
  }
}

module attributes {stable_mosaic.version = 11 : i64} {
  func.func @_mlp_kernel(%arg0: i32, %arg1: memref<32x128xf32, #tpu.memory_space<vmem>>, %arg2: memref<32x32xf32, #tpu.memory_space<vmem>>, %arg3: memref<32x1xf32, #tpu.memory_space<vmem>>, %arg4: memref<2x32x32xf32, #tpu.memory_space<vmem>>, %arg5: memref<2x32x1xf32, #tpu.memory_space<vmem>>, %arg6: memref<2x32x32xf32, #tpu.memory_space<vmem>>, %arg7: memref<2x32x1xf32, #tpu.memory_space<vmem>>, %arg8: memref<1x32xf32, #tpu.memory_space<vmem>>, %arg9: memref<1x1xf32, #tpu.memory_space<vmem>>, %arg10: memref<1x128xf32, #tpu.memory_space<vmem>>) attributes {dimension_semantics = [#tpu.dimension_semantics<parallel>], iteration_bounds = array<i64: 1>, scalar_prefetch = 0 : i64, scratch_operands = 0 : i64, tpu.core_type = #tpu.core_type<tc>, window_params = [{transform_indices = @transform_0, window_bounds = array<i64: 32, 128>}, {pipeline_mode = #tpu.pipeline_mode<synchronous>, transform_indices = @transform_1, window_bounds = array<i64: 32, 32>}, {pipeline_mode = #tpu.pipeline_mode<synchronous>, transform_indices = @transform_2, window_bounds = array<i64: 32, 1>}, {pipeline_mode = #tpu.pipeline_mode<synchronous>, transform_indices = @transform_3, window_bounds = array<i64: 2, 32, 32>}, {pipeline_mode = #tpu.pipeline_mode<synchronous>, transform_indices = @transform_4, window_bounds = array<i64: 2, 32, 1>}, {pipeline_mode = #tpu.pipeline_mode<synchronous>, transform_indices = @transform_5, window_bounds = array<i64: 2, 32, 32>}, {pipeline_mode = #tpu.pipeline_mode<synchronous>, transform_indices = @transform_6, window_bounds = array<i64: 2, 32, 1>}, {pipeline_mode = #tpu.pipeline_mode<synchronous>, transform_indices = @transform_7, window_bounds = array<i64: 1, 32>}, {pipeline_mode = #tpu.pipeline_mode<synchronous>, transform_indices = @transform_8, window_bounds = array<i64: 1, 1>}, {transform_indices = @transform_9, window_bounds = array<i64: 1, 128>}]} {
    %c0 = arith.constant 0 : index
    %c0_0 = arith.constant 0 : index
    %0 = vector.load %arg1[%c0, %c0_0] : memref<32x128xf32, #tpu.memory_space<vmem>>, vector<32x128xf32>
    %c0_1 = arith.constant 0 : index
    %c0_2 = arith.constant 0 : index
    %1 = vector.load %arg2[%c0_1, %c0_2] : memref<32x32xf32, #tpu.memory_space<vmem>>, vector<32x32xf32>
    %cst = arith.constant dense<0.000000e+00> : vector<32x128xf32>
    %2 = tpu.matmul %1, %0, %cst {dimension_numbers = #tpu.dot_dimension_numbers<[1], [0], [0], [1], [0, 0, 1, 1], [], []>} : vector<32x32xf32>, vector<32x128xf32>, vector<32x128xf32> -> vector<32x128xf32>
    %c0_3 = arith.constant 0 : index
    %c0_4 = arith.constant 0 : index
    %3 = vector.load %arg3[%c0_3, %c0_4] : memref<32x1xf32, #tpu.memory_space<vmem>>, vector<32x1xf32>
    %4 = vector.broadcast %3 : vector<32x1xf32> to vector<32x128xf32>
    %5 = arith.addf %2, %4 : vector<32x128xf32>
    %c0_5 = arith.constant 0 : index
    %c0_6 = arith.constant 0 : index
    %c0_7 = arith.constant 0 : index
    %6 = vector.load %arg4[%c0_5, %c0_6, %c0_7] : memref<2x32x32xf32, #tpu.memory_space<vmem>>, vector<1x32x32xf32>
    %7 = vector.shape_cast %6 : vector<1x32x32xf32> to vector<32x32xf32>
    %cst_8 = arith.constant dense<0.000000e+00> : vector<32x128xf32>
    %8 = tpu.matmul %7, %5, %cst_8 {dimension_numbers = #tpu.dot_dimension_numbers<[1], [0], [0], [1], [0, 0, 1, 1], [], []>} : vector<32x32xf32>, vector<32x128xf32>, vector<32x128xf32> -> vector<32x128xf32>
    %c0_9 = arith.constant 0 : index
    %c0_10 = arith.constant 0 : index
    %c0_11 = arith.constant 0 : index
    %9 = vector.load %arg5[%c0_9, %c0_10, %c0_11] : memref<2x32x1xf32, #tpu.memory_space<vmem>>, vector<1x32x1xf32>
    %10 = vector.shape_cast %9 : vector<1x32x1xf32> to vector<32x1xf32>
    %11 = vector.broadcast %10 : vector<32x1xf32> to vector<32x128xf32>
    %12 = arith.addf %8, %11 : vector<32x128xf32>
    %cst_12 = arith.constant 0.000000e+00 : f32
    %13 = vector.broadcast %cst_12 : f32 to vector<32x128xf32>
    %14 = arith.maximumf %12, %13 : vector<32x128xf32>
    %c0_13 = arith.constant 0 : index
    %c0_14 = arith.constant 0 : index
    %c0_15 = arith.constant 0 : index
    %15 = vector.load %arg6[%c0_13, %c0_14, %c0_15] : memref<2x32x32xf32, #tpu.memory_space<vmem>>, vector<1x32x32xf32>
    %16 = vector.shape_cast %15 : vector<1x32x32xf32> to vector<32x32xf32>
    %cst_16 = arith.constant dense<0.000000e+00> : vector<32x128xf32>
    %17 = tpu.matmul %16, %14, %cst_16 {dimension_numbers = #tpu.dot_dimension_numbers<[1], [0], [0], [1], [0, 0, 1, 1], [], []>} : vector<32x32xf32>, vector<32x128xf32>, vector<32x128xf32> -> vector<32x128xf32>
    %c0_17 = arith.constant 0 : index
    %c0_18 = arith.constant 0 : index
    %c0_19 = arith.constant 0 : index
    %18 = vector.load %arg7[%c0_17, %c0_18, %c0_19] : memref<2x32x1xf32, #tpu.memory_space<vmem>>, vector<1x32x1xf32>
    %19 = vector.shape_cast %18 : vector<1x32x1xf32> to vector<32x1xf32>
    %20 = vector.broadcast %19 : vector<32x1xf32> to vector<32x128xf32>
    %21 = arith.addf %17, %20 : vector<32x128xf32>
    %22 = arith.addf %21, %5 : vector<32x128xf32>
    %cst_20 = arith.constant 0.000000e+00 : f32
    %23 = vector.broadcast %cst_20 : f32 to vector<32x128xf32>
    %24 = arith.maximumf %22, %23 : vector<32x128xf32>
    %c1 = arith.constant 1 : index
    %c0_21 = arith.constant 0 : index
    %c0_22 = arith.constant 0 : index
    %25 = vector.load %arg4[%c1, %c0_21, %c0_22] : memref<2x32x32xf32, #tpu.memory_space<vmem>>, vector<1x32x32xf32>
    %26 = vector.shape_cast %25 : vector<1x32x32xf32> to vector<32x32xf32>
    %cst_23 = arith.constant dense<0.000000e+00> : vector<32x128xf32>
    %27 = tpu.matmul %26, %24, %cst_23 {dimension_numbers = #tpu.dot_dimension_numbers<[1], [0], [0], [1], [0, 0, 1, 1], [], []>} : vector<32x32xf32>, vector<32x128xf32>, vector<32x128xf32> -> vector<32x128xf32>
    %c1_24 = arith.constant 1 : index
    %c0_25 = arith.constant 0 : index
    %c0_26 = arith.constant 0 : index
    %28 = vector.load %arg5[%c1_24, %c0_25, %c0_26] : memref<2x32x1xf32, #tpu.memory_space<vmem>>, vector<1x32x1xf32>
    %29 = vector.shape_cast %28 : vector<1x32x1xf32> to vector<32x1xf32>
    %30 = vector.broadcast %29 : vector<32x1xf32> to vector<32x128xf32>
    %31 = arith.addf %27, %30 : vector<32x128xf32>
    %cst_27 = arith.constant 0.000000e+00 : f32
    %32 = vector.broadcast %cst_27 : f32 to vector<32x128xf32>
    %33 = arith.maximumf %31, %32 : vector<32x128xf32>
    %c1_28 = arith.constant 1 : index
    %c0_29 = arith.constant 0 : index
    %c0_30 = arith.constant 0 : index
    %34 = vector.load %arg6[%c1_28, %c0_29, %c0_30] : memref<2x32x32xf32, #tpu.memory_space<vmem>>, vector<1x32x32xf32>
    %35 = vector.shape_cast %34 : vector<1x32x32xf32> to vector<32x32xf32>
    %cst_31 = arith.constant dense<0.000000e+00> : vector<32x128xf32>
    %36 = tpu.matmul %35, %33, %cst_31 {dimension_numbers = #tpu.dot_dimension_numbers<[1], [0], [0], [1], [0, 0, 1, 1], [], []>} : vector<32x32xf32>, vector<32x128xf32>, vector<32x128xf32> -> vector<32x128xf32>
    %c1_32 = arith.constant 1 : index
    %c0_33 = arith.constant 0 : index
    %c0_34 = arith.constant 0 : index
    %37 = vector.load %arg7[%c1_32, %c0_33, %c0_34] : memref<2x32x1xf32, #tpu.memory_space<vmem>>, vector<1x32x1xf32>
    %38 = vector.shape_cast %37 : vector<1x32x1xf32> to vector<32x1xf32>
    %39 = vector.broadcast %38 : vector<32x1xf32> to vector<32x128xf32>
    %40 = arith.addf %36, %39 : vector<32x128xf32>
    %41 = arith.addf %40, %24 : vector<32x128xf32>
    %cst_35 = arith.constant 0.000000e+00 : f32
    %42 = vector.broadcast %cst_35 : f32 to vector<32x128xf32>
    %43 = arith.maximumf %41, %42 : vector<32x128xf32>
    %c0_36 = arith.constant 0 : index
    %c0_37 = arith.constant 0 : index
    %44 = vector.load %arg8[%c0_36, %c0_37] : memref<1x32xf32, #tpu.memory_space<vmem>>, vector<1x32xf32>
    %cst_38 = arith.constant dense<0.000000e+00> : vector<1x128xf32>
    %45 = tpu.matmul %44, %43, %cst_38 {dimension_numbers = #tpu.dot_dimension_numbers<[1], [0], [0], [1], [0, 0, 1, 1], [], []>} : vector<1x32xf32>, vector<32x128xf32>, vector<1x128xf32> -> vector<1x128xf32>
    %c0_39 = arith.constant 0 : index
    %c0_40 = arith.constant 0 : index
    %46 = vector.load %arg9[%c0_39, %c0_40] : memref<1x1xf32, #tpu.memory_space<vmem>>, vector<1x1xf32>
    %47 = vector.broadcast %46 : vector<1x1xf32> to vector<1x128xf32>
    %48 = arith.addf %45, %47 : vector<1x128xf32>
    %cst_41 = arith.constant 0.000000e+00 : f32
    %49 = vector.broadcast %cst_41 : f32 to vector<1x128xf32>
    %50 = arith.maximumf %48, %49 : vector<1x128xf32>
    %c0_42 = arith.constant 0 : index
    %c0_43 = arith.constant 0 : index
    %51 = vector.load %arg10[%c0_42, %c0_43] : memref<1x128xf32, #tpu.memory_space<vmem>>, vector<1x128xf32>
    tpu.vector_store %arg10[%c0_42, %c0_43], %50 {strides = array<i32>} : memref<1x128xf32, #tpu.memory_space<vmem>>, vector<1x128xf32>,
    return
  }
  func.func @transform_0(%arg0: i32) -> (i32, i32) {
    %c0_i32 = arith.constant 0 : i32
    %c0_i32_0 = arith.constant 0 : i32
    return %c0_i32, %arg0 : i32, i32
  }
  func.func @transform_1(%arg0: i32) -> (i32, i32) {
    %c0_i32 = arith.constant 0 : i32
    %c0_i32_0 = arith.constant 0 : i32
    %c0_i32_1 = arith.constant 0 : i32
    return %c0_i32, %c0_i32_0 : i32, i32
  }
  func.func @transform_2(%arg0: i32) -> (i32, i32) {
    %c0_i32 = arith.constant 0 : i32
    %c0_i32_0 = arith.constant 0 : i32
    %c0_i32_1 = arith.constant 0 : i32
    return %c0_i32, %c0_i32_0 : i32, i32
  }
  func.func @transform_3(%arg0: i32) -> (i32, i32, i32) {
    %c0_i32 = arith.constant 0 : i32
    %c0_i32_0 = arith.constant 0 : i32
    %c0_i32_1 = arith.constant 0 : i32
    %c0_i32_2 = arith.constant 0 : i32
    return %c0_i32, %c0_i32_0, %c0_i32_1 : i32, i32, i32
  }
  func.func @transform_4(%arg0: i32) -> (i32, i32, i32) {
    %c0_i32 = arith.constant 0 : i32
    %c0_i32_0 = arith.constant 0 : i32
    %c0_i32_1 = arith.constant 0 : i32
    %c0_i32_2 = arith.constant 0 : i32
    return %c0_i32, %c0_i32_0, %c0_i32_1 : i32, i32, i32
  }
  func.func @transform_5(%arg0: i32) -> (i32, i32, i32) {
    %c0_i32 = arith.constant 0 : i32
    %c0_i32_0 = arith.constant 0 : i32
    %c0_i32_1 = arith.constant 0 : i32
    %c0_i32_2 = arith.constant 0 : i32
    return %c0_i32, %c0_i32_0, %c0_i32_1 : i32, i32, i32
  }
  func.func @transform_6(%arg0: i32) -> (i32, i32, i32) {
    %c0_i32 = arith.constant 0 : i32
    %c0_i32_0 = arith.constant 0 : i32
    %c0_i32_1 = arith.constant 0 : i32
    %c0_i32_2 = arith.constant 0 : i32
    return %c0_i32, %c0_i32_0, %c0_i32_1 : i32, i32, i32
  }
  func.func @transform_7(%arg0: i32) -> (i32, i32) {
    %c0_i32 = arith.constant 0 : i32
    %c0_i32_0 = arith.constant 0 : i32
    %c0_i32_1 = arith.constant 0 : i32
    return %c0_i32, %c0_i32_0 : i32, i32
  }
  func.func @transform_8(%arg0: i32) -> (i32, i32) {
    %c0_i32 = arith.constant 0 : i32
    %c0_i32_0 = arith.constant 0 : i32
    %c0_i32_1 = arith.constant 0 : i32
    return %c0_i32, %c0_i32_0 : i32, i32
  }
  func.func @transform_9(%arg0: i32) -> (i32, i32) {
    %c0_i32 = arith.constant 0 : i32
    %c0_i32_0 = arith.constant 0 : i32
    return %c0_i32, %arg0 : i32, i32
  }
}

</mosaic_0001>

<llo_original>
// kernel: tpu_custom_call.1
$region0: #{tpu_custom_call.1}
  #allocation0 [shape = 'u32[]', space=smem, size = 0x4, offset = 0x4, fixed_abs, tag = 'smem constant byte address 0x4 - core index']
  #allocation1 [shape = 'u32[72,128]{1,0:T(1,128)}', space=vmem, size = 0x9000, scoped, tag = 'internal scratch']
  #allocation2 [shape = 'f32[1,1]{1,0:T(1,128)S(1)}', space=vmem, size = 0x200, scoped, tag = 'scoped memory for tpu_custom_call.1']
  %s0 = inlined_call_operand.vmem [shape: f32[32,128], index: 0, kind: input, shape index: {}]
  %s1 = inlined_call_operand.hbm [shape: f32[32,32], index: 1, kind: input, shape index: {}]
  %s2 = inlined_call_operand.vmem [shape: f32[32,1], index: 2, kind: input, shape index: {}]
  %s3 = inlined_call_operand.vmem [shape: f32[2,32,32], index: 3, kind: input, shape index: {}]
  %s4 = inlined_call_operand.vmem [shape: f32[2,32,1], index: 4, kind: input, shape index: {}]
  %s5 = inlined_call_operand.vmem [shape: f32[2,32,32], index: 5, kind: input, shape index: {}]
  %s6 = inlined_call_operand.vmem [shape: f32[2,32,1], index: 6, kind: input, shape index: {}]
  %s7 = inlined_call_operand.vmem [shape: f32[1,32], index: 7, kind: input, shape index: {}]
  %s8 = inlined_call_operand.<no memory space> [shape: f32[1,1], index: 8, kind: input, shape index: {}]
  %s9 = inlined_call_operand.hbm [shape: f32[1,128], index: 9, kind: output, shape index: {}]
  %s10 = sld [smem:[#allocation0]]
  $region50: #{tpu_custom_call.1} parent=0
    _
  %s12 = ssub.s32 1, %s10
  %s13 = scalar_select 0, %s12, %s10
  %v14 = vstv %s8
  %15 = vst [vmem:[#allocation2] sm:$0x1] %v14
  $region1: #{tpu_custom_call.1} parent=0
    #allocation3 [shape = 'u8[16384]{0}', space=vmem, size = 0x4000, scoped, tag = 'input window, operand 1, single buffered']
    #allocation4 [shape = 's32[1]{0}', space=sflag, size = 0x4, scoped, tag = 'scoped memory for tpu_custom_call.1']
    #allocation5 [shape = 's32[1]{0}', space=sflag, size = 0x4, scoped, tag = 'scoped memory for tpu_custom_call.1']
    #allocation6 [shape = 'u8[512]{0}', space=vmem, size = 0x400, scoped, tag = 'output window, operand 0, single buffered']
    %16 = vsyncpa [#allocation4], 0
    %17 = vsyncpa [#allocation5], 0
    // Predicated region
    $region2: #{tpu_custom_call.1} parent=1 // pred_check
      _
    $region3: #{tpu_custom_call.1} parent=1 // pred_check_branch
      %19 = sbr.rel (0) target = $region5
    $region4: #{tpu_custom_call.1} parent=1 // pred_region
      _
    $region5: #{tpu_custom_call.1} parent=1 // pred_fallthru
      _
    // Predicated region
    $region6: #{tpu_custom_call.1} parent=1 // pred_check
      _
    $region7: #{tpu_custom_call.1} parent=1 // pred_check_branch
      %21 = sbr.rel (0) target = $region9
    $region8: #{tpu_custom_call.1} parent=1 // pred_region
      %23 = vsyncadd [#allocation4], 0
      %s24 = sshll.u32 %s1, 4
      %s25 = int_to_ptr.hbm [resolvable:$true] %s24
      %s26 = sshll.u32 [#allocation3], 4
      %s27 = int_to_ptr.vmem [resolvable:$true] %s26
      %32 = dma.hbm_to_vmem [thread:$0]  %s25, 512, %s27, [#allocation4], 128, 128, 8
    $region9: #{tpu_custom_call.1} parent=1 // pred_fallthru
      _
    // Predicated region
    $region10: #{tpu_custom_call.1} parent=1 // pred_check
      _
    $region11: #{tpu_custom_call.1} parent=1 // pred_check_branch
      %34 = sbr.rel (0) target = $region13
    $region12: #{tpu_custom_call.1} parent=1 // pred_region
      _
    $region13: #{tpu_custom_call.1} parent=1 // pred_fallthru
      _
    // Predicated region
    $region14: #{tpu_custom_call.1} parent=1 // pred_check
      _
    $region15: #{tpu_custom_call.1} parent=1 // pred_check_branch
      %36 = sbr.rel (0) target = $region17
    $region16: #{tpu_custom_call.1} parent=1 // pred_region
      _
    $region17: #{tpu_custom_call.1} parent=1 // pred_fallthru
      _
    // Predicated region
    $region18: #{tpu_custom_call.1} parent=1 // pred_check
      _
    $region19: #{tpu_custom_call.1} parent=1 // pred_check_branch
      %38 = sbr.rel (0) target = $region21
    $region20: #{tpu_custom_call.1} parent=1 // pred_region
      _
    $region21: #{tpu_custom_call.1} parent=1 // pred_fallthru
      _
    // Predicated region
    $region22: #{tpu_custom_call.1} parent=1 // pred_check
      _
    $region23: #{tpu_custom_call.1} parent=1 // pred_check_branch
      %40 = sbr.rel (0) target = $region25
    $region24: #{tpu_custom_call.1} parent=1 // pred_region
      _
    $region25: #{tpu_custom_call.1} parent=1 // pred_fallthru
      _
    // Predicated region
    $region26: #{tpu_custom_call.1} parent=1 // pred_check
      _
    $region27: #{tpu_custom_call.1} parent=1 // pred_check_branch
      %42 = sbr.rel (0) target = $region29
    $region28: #{tpu_custom_call.1} parent=1 // pred_region
      _
    $region29: #{tpu_custom_call.1} parent=1 // pred_fallthru
      _
    // Predicated region
    $region30: #{tpu_custom_call.1} parent=1 // pred_check
      _
    $region31: #{tpu_custom_call.1} parent=1 // pred_check_branch
      %44 = sbr.rel (0) target = $region33
    $region32: #{tpu_custom_call.1} parent=1 // pred_region
      _
    $region33: #{tpu_custom_call.1} parent=1 // pred_fallthru
      _
    // Predicated region
    $region34: #{tpu_custom_call.1} parent=1 // pred_check
      _
    $region35: #{tpu_custom_call.1} parent=1 // pred_check_branch
      %46 = sbr.rel (0) target = $region37
    $region36: #{tpu_custom_call.1} parent=1 // pred_region
      _
    $region37: #{tpu_custom_call.1} parent=1 // pred_fallthru
      _
    // Predicated region
    $region38: #{tpu_custom_call.1} parent=1 // pred_check
      _
    $region39: #{tpu_custom_call.1} parent=1 // pred_check_branch
      %48 = sbr.rel (0) target = $region41
    $region40: #{tpu_custom_call.1} parent=1 // pred_region
      %50 = dma.done [#allocation4], 512
    $region41: #{tpu_custom_call.1} parent=1 // pred_fallthru
      _
    %v51 = vld [vmem:[%s0] sm:$0xff]
    %v52 = vld [vmem:[%s0 + $0x8] sm:$0xff]
    %v53 = vld [vmem:[%s0 + $0x10] sm:$0xff]
    %v54 = vld [vmem:[%s0 + $0x18] sm:$0xff]
    %v55 = vld [vmem:[#allocation3] sm:$0xff]
    %v56 = vld [vmem:[#allocation3 + $0x8] sm:$0xff]
    %v57 = vld [vmem:[#allocation3 + $0x10] sm:$0xff]
    %v58 = vld [vmem:[#allocation3 + $0x18] sm:$0xff]
    %v59 = vld [vmem:[%s2] sm:$0xff]
    %v60 = vld [vmem:[%s2 + $0x8] sm:$0xff]
    %v61 = vld [vmem:[%s2 + $0x10] sm:$0xff]
    %v62 = vld [vmem:[%s2 + $0x18] sm:$0xff]
    %64 = vset.pattern.permute.xlu0 0
    %65 = vperm.xlu0 %64, %v59
    %v66 = vpop.permute.xlu0 %65
    %69 = vset.pattern.permute.xlu0 0
    %70 = vperm.xlu0 %69, %v60
    %v71 = vpop.permute.xlu0 %70
    %74 = vset.pattern.permute.xlu0 0
    %75 = vperm.xlu0 %74, %v61
    %v76 = vpop.permute.xlu0 %75
    %79 = vset.pattern.permute.xlu0 0
    %80 = vperm.xlu0 %79, %v62
    %v81 = vpop.permute.xlu0 %80
    %vm83 = vcmask 261120
    %v85 = vsel %vm83, %v55, 0
    %v88 = vsel %vm83, %v56, 0
    %v91 = vsel %vm83, %v57, 0
    %v94 = vsel %vm83, %v58, 0
    %96 = vmatpush.msra.mxu0 0.0
    %97 = vmatpush.msra.mxu0 0.0
    %98 = vmatpush.msra.mxu0 0.0
    %99 = vmatpush.msra.mxu0 0.0
    %100 = vmatpush.msra.mxu0 0.0
    %101 = vmatpush.msra.mxu0 0.0
    %102 = vmatpush.msra.mxu0 0.0
    %103 = vmatpush.msra.mxu0 0.0
    %104 = vmatpush.msra.mxu0 0.0
    %105 = vmatpush.msra.mxu0 0.0
    %106 = vmatpush.msra.mxu0 0.0
    %107 = vmatpush.msra.mxu0 0.0
    %108 = vmatpush.msra.mxu0 %v54
    %109 = vmatpush.msra.mxu0 %v53
    %110 = vmatpush.msra.mxu0 %v52
    %111 = vmatpush.msra.mxu0 %v51
    %112 = vmatmul.f32.gmra.mxu0 %v85
    %v113 = vpop.f32.mrf.mxu0
    %v114 = vadd.f32 %v66, %v113
    %115 = vmatmul.f32.gmra.mxu0 %v88
    %v116 = vpop.f32.mrf.mxu0
    %v117 = vadd.f32 %v71, %v116
    %118 = vmatmul.f32.gmra.mxu0 %v91
    %v119 = vpop.f32.mrf.mxu0
    %v120 = vadd.f32 %v76, %v119
    %121 = vmatmul.f32.gmra.mxu0 %v94
    %v122 = vpop.f32.mrf.mxu0
    %v123 = vadd.f32 %v81, %v122
    %124 = vdwg.mxu0
    %v125 = vld [vmem:[%s3] sm:$0xff]
    %v126 = vld [vmem:[%s3 + $0x8] sm:$0xff]
    %v127 = vld [vmem:[%s3 + $0x10] sm:$0xff]
    %v128 = vld [vmem:[%s3 + $0x18] sm:$0xff]
    %v129 = vld [vmem:[%s4] sm:$0xff]
    %v130 = vld [vmem:[%s4 + $0x8] sm:$0xff]
    %v131 = vld [vmem:[%s4 + $0x10] sm:$0xff]
    %v132 = vld [vmem:[%s4 + $0x18] sm:$0xff]
    %134 = vset.pattern.permute.xlu0 0
    %135 = vperm.xlu0 %134, %v129
    %v136 = vpop.permute.xlu0 %135
    %139 = vset.pattern.permute.xlu0 0
    %140 = vperm.xlu0 %139, %v130
    %v141 = vpop.permute.xlu0 %140
    %144 = vset.pattern.permute.xlu0 0
    %145 = vperm.xlu0 %144, %v131
    %v146 = vpop.permute.xlu0 %145
    %149 = vset.pattern.permute.xlu0 0
    %150 = vperm.xlu0 %149, %v132
    %v151 = vpop.permute.xlu0 %150
    %v154 = vsel %vm83, %v125, 0
    %v157 = vsel %vm83, %v126, 0
    %v160 = vsel %vm83, %v127, 0
    %v163 = vsel %vm83, %v128, 0
    %165 = vmatpush.msra.mxu0 0.0
    %166 = vmatpush.msra.mxu0 0.0
    %167 = vmatpush.msra.mxu0 0.0
    %168 = vmatpush.msra.mxu0 0.0
    %169 = vmatpush.msra.mxu0 0.0
    %170 = vmatpush.msra.mxu0 0.0
    %171 = vmatpush.msra.mxu0 0.0
    %172 = vmatpush.msra.mxu0 0.0
    %173 = vmatpush.msra.mxu0 0.0
    %174 = vmatpush.msra.mxu0 0.0
    %175 = vmatpush.msra.mxu0 0.0
    %176 = vmatpush.msra.mxu0 0.0
    %177 = vmatpush.msra.mxu0 %v123
    %178 = vmatpush.msra.mxu0 %v120
    %179 = vmatpush.msra.mxu0 %v117
    %180 = vmatpush.msra.mxu0 %v114
    %181 = vmatmul.f32.gmra.mxu0 %v154
    %v182 = vpop.f32.mrf.mxu0
    %v183 = vadd.f32 %v136, %v182
    %184 = vmatmul.f32.gmra.mxu0 %v157
    %v185 = vpop.f32.mrf.mxu0
    %v186 = vadd.f32 %v141, %v185
    %187 = vmatmul.f32.gmra.mxu0 %v160
    %v188 = vpop.f32.mrf.mxu0
    %v189 = vadd.f32 %v146, %v188
    %190 = vmatmul.f32.gmra.mxu0 %v163
    %v191 = vpop.f32.mrf.mxu0
    %v192 = vadd.f32 %v151, %v191
    %193 = vdwg.mxu0
    %v194 = vmax.f32 %v183, 0.0
    %v195 = vmax.f32 %v186, 0.0
    %v196 = vmax.f32 %v189, 0.0
    %v197 = vmax.f32 %v192, 0.0
    %v198 = vld [vmem:[%s5] sm:$0xff]
    %v199 = vld [vmem:[%s5 + $0x8] sm:$0xff]
    %v200 = vld [vmem:[%s5 + $0x10] sm:$0xff]
    %v201 = vld [vmem:[%s5 + $0x18] sm:$0xff]
    %v202 = vld [vmem:[%s6] sm:$0xff]
    %v203 = vld [vmem:[%s6 + $0x8] sm:$0xff]
    %v204 = vld [vmem:[%s6 + $0x10] sm:$0xff]
    %v205 = vld [vmem:[%s6 + $0x18] sm:$0xff]
    %207 = vset.pattern.permute.xlu0 0
    %208 = vperm.xlu0 %207, %v202
    %v209 = vpop.permute.xlu0 %208
    %212 = vset.pattern.permute.xlu0 0
    %213 = vperm.xlu0 %212, %v203
    %v214 = vpop.permute.xlu0 %213
    %217 = vset.pattern.permute.xlu0 0
    %218 = vperm.xlu0 %217, %v204
    %v219 = vpop.permute.xlu0 %218
    %222 = vset.pattern.permute.xlu0 0
    %223 = vperm.xlu0 %222, %v205
    %v224 = vpop.permute.xlu0 %223
    %v227 = vsel %vm83, %v198, 0
    %v230 = vsel %vm83, %v199, 0
    %v233 = vsel %vm83, %v200, 0
    %v236 = vsel %vm83, %v201, 0
    %238 = vmatpush.msra.mxu0 0.0
    %239 = vmatpush.msra.mxu0 0.0
    %240 = vmatpush.msra.mxu0 0.0
    %241 = vmatpush.msra.mxu0 0.0
    %242 = vmatpush.msra.mxu0 0.0
    %243 = vmatpush.msra.mxu0 0.0
    %244 = vmatpush.msra.mxu0 0.0
    %245 = vmatpush.msra.mxu0 0.0
    %246 = vmatpush.msra.mxu0 0.0
    %247 = vmatpush.msra.mxu0 0.0
    %248 = vmatpush.msra.mxu0 0.0
    %249 = vmatpush.msra.mxu0 0.0
    %250 = vmatpush.msra.mxu0 %v197
    %251 = vmatpush.msra.mxu0 %v196
    %252 = vmatpush.msra.mxu0 %v195
    %253 = vmatpush.msra.mxu0 %v194
    %254 = vmatmul.f32.gmra.mxu0 %v227
    %v255 = vpop.f32.mrf.mxu0
    %v256 = vadd.f32 %v209, %v255
    %257 = vmatmul.f32.gmra.mxu0 %v230
    %v258 = vpop.f32.mrf.mxu0
    %v259 = vadd.f32 %v214, %v258
    %260 = vmatmul.f32.gmra.mxu0 %v233
    %v261 = vpop.f32.mrf.mxu0
    %v262 = vadd.f32 %v219, %v261
    %263 = vmatmul.f32.gmra.mxu0 %v236
    %v264 = vpop.f32.mrf.mxu0
    %v265 = vadd.f32 %v224, %v264
    %266 = vdwg.mxu0
    %v267 = vadd.f32 %v256, %v114
    %v268 = vadd.f32 %v259, %v117
    %v269 = vadd.f32 %v262, %v120
    %v270 = vadd.f32 %v265, %v123
    %v271 = vmax.f32 %v267, 0.0
    %v272 = vmax.f32 %v268, 0.0
    %v273 = vmax.f32 %v269, 0.0
    %v274 = vmax.f32 %v270, 0.0
    %s275 = scalar_lea.vmem %s3, 32
    %v276 = vld [vmem:[%s275] sm:$0xff]
    %v277 = vld [vmem:[%s275 + $0x8] sm:$0xff]
    %v278 = vld [vmem:[%s275 + $0x10] sm:$0xff]
    %v279 = vld [vmem:[%s275 + $0x18] sm:$0xff]
    %s280 = scalar_lea.vmem %s4, 32
    %v281 = vld [vmem:[%s280] sm:$0xff]
    %v282 = vld [vmem:[%s280 + $0x8] sm:$0xff]
    %v283 = vld [vmem:[%s280 + $0x10] sm:$0xff]
    %v284 = vld [vmem:[%s280 + $0x18] sm:$0xff]
    %286 = vset.pattern.permute.xlu0 0
    %287 = vperm.xlu0 %286, %v281
    %v288 = vpop.permute.xlu0 %287
    %291 = vset.pattern.permute.xlu0 0
    %292 = vperm.xlu0 %291, %v282
    %v293 = vpop.permute.xlu0 %292
    %296 = vset.pattern.permute.xlu0 0
    %297 = vperm.xlu0 %296, %v283
    %v298 = vpop.permute.xlu0 %297
    %301 = vset.pattern.permute.xlu0 0
    %302 = vperm.xlu0 %301, %v284
    %v303 = vpop.permute.xlu0 %302
    %v306 = vsel %vm83, %v276, 0
    %v309 = vsel %vm83, %v277, 0
    %v312 = vsel %vm83, %v278, 0
    %v315 = vsel %vm83, %v279, 0
    %317 = vmatpush.msra.mxu0 0.0
    %318 = vmatpush.msra.mxu0 0.0
    %319 = vmatpush.msra.mxu0 0.0
    %320 = vmatpush.msra.mxu0 0.0
    %321 = vmatpush.msra.mxu0 0.0
    %322 = vmatpush.msra.mxu0 0.0
    %323 = vmatpush.msra.mxu0 0.0
    %324 = vmatpush.msra.mxu0 0.0
    %325 = vmatpush.msra.mxu0 0.0
    %326 = vmatpush.msra.mxu0 0.0
    %327 = vmatpush.msra.mxu0 0.0
    %328 = vmatpush.msra.mxu0 0.0
    %329 = vmatpush.msra.mxu0 %v274
    %330 = vmatpush.msra.mxu0 %v273
    %331 = vmatpush.msra.mxu0 %v272
    %332 = vmatpush.msra.mxu0 %v271
    %333 = vmatmul.f32.gmra.mxu0 %v306
    %v334 = vpop.f32.mrf.mxu0
    %v335 = vadd.f32 %v288, %v334
    %336 = vmatmul.f32.gmra.mxu0 %v309
    %v337 = vpop.f32.mrf.mxu0
    %v338 = vadd.f32 %v293, %v337
    %339 = vmatmul.f32.gmra.mxu0 %v312
    %v340 = vpop.f32.mrf.mxu0
    %v341 = vadd.f32 %v298, %v340
    %342 = vmatmul.f32.gmra.mxu0 %v315
    %v343 = vpop.f32.mrf.mxu0
    %v344 = vadd.f32 %v303, %v343
    %345 = vdwg.mxu0
    %v346 = vmax.f32 %v335, 0.0
    %v347 = vmax.f32 %v338, 0.0
    %v348 = vmax.f32 %v341, 0.0
    %v349 = vmax.f32 %v344, 0.0
    %s350 = scalar_lea.vmem %s5, 32
    %v351 = vld [vmem:[%s350] sm:$0xff]
    %v352 = vld [vmem:[%s350 + $0x8] sm:$0xff]
    %v353 = vld [vmem:[%s350 + $0x10] sm:$0xff]
    %v354 = vld [vmem:[%s350 + $0x18] sm:$0xff]
    %s355 = scalar_lea.vmem %s6, 32
    %v356 = vld [vmem:[%s355] sm:$0xff]
    %v357 = vld [vmem:[%s355 + $0x8] sm:$0xff]
    %v358 = vld [vmem:[%s355 + $0x10] sm:$0xff]
    %v359 = vld [vmem:[%s355 + $0x18] sm:$0xff]
    %361 = vset.pattern.permute.xlu0 0
    %362 = vperm.xlu0 %361, %v356
    %v363 = vpop.permute.xlu0 %362
    %366 = vset.pattern.permute.xlu0 0
    %367 = vperm.xlu0 %366, %v357
    %v368 = vpop.permute.xlu0 %367
    %371 = vset.pattern.permute.xlu0 0
    %372 = vperm.xlu0 %371, %v358
    %v373 = vpop.permute.xlu0 %372
    %376 = vset.pattern.permute.xlu0 0
    %377 = vperm.xlu0 %376, %v359
    %v378 = vpop.permute.xlu0 %377
    %v381 = vsel %vm83, %v351, 0
    %v384 = vsel %vm83, %v352, 0
    %v387 = vsel %vm83, %v353, 0
    %v390 = vsel %vm83, %v354, 0
    %392 = vmatpush.msra.mxu0 0.0
    %393 = vmatpush.msra.mxu0 0.0
    %394 = vmatpush.msra.mxu0 0.0
    %395 = vmatpush.msra.mxu0 0.0
    %396 = vmatpush.msra.mxu0 0.0
    %397 = vmatpush.msra.mxu0 0.0
    %398 = vmatpush.msra.mxu0 0.0
    %399 = vmatpush.msra.mxu0 0.0
    %400 = vmatpush.msra.mxu0 0.0
    %401 = vmatpush.msra.mxu0 0.0
    %402 = vmatpush.msra.mxu0 0.0
    %403 = vmatpush.msra.mxu0 0.0
    %404 = vmatpush.msra.mxu0 %v349
    %405 = vmatpush.msra.mxu0 %v348
    %406 = vmatpush.msra.mxu0 %v347
    %407 = vmatpush.msra.mxu0 %v346
    %408 = vmatmul.f32.gmra.mxu0 %v381
    %v409 = vpop.f32.mrf.mxu0
    %v410 = vadd.f32 %v363, %v409
    %411 = vmatmul.f32.gmra.mxu0 %v384
    %v412 = vpop.f32.mrf.mxu0
    %v413 = vadd.f32 %v368, %v412
    %414 = vmatmul.f32.gmra.mxu0 %v387
    %v415 = vpop.f32.mrf.mxu0
    %v416 = vadd.f32 %v373, %v415
    %417 = vmatmul.f32.gmra.mxu0 %v390
    %v418 = vpop.f32.mrf.mxu0
    %v419 = vadd.f32 %v378, %v418
    %420 = vdwg.mxu0
    %v421 = vadd.f32 %v410, %v271
    %v422 = vadd.f32 %v413, %v272
    %v423 = vadd.f32 %v416, %v273
    %v424 = vadd.f32 %v419, %v274
    %v425 = vmax.f32 %v421, 0.0
    %v426 = vmax.f32 %v422, 0.0
    %v427 = vmax.f32 %v423, 0.0
    %v428 = vmax.f32 %v424, 0.0
    %v429 = vld [vmem:[%s7] sm:$0x1]
    %v430 = vld [vmem:[#allocation2] sm:$0x1]
    %432 = vset.pattern.permute.xlu0 0
    %433 = vperm.xlu0 %432, %v430
    %v434 = vpop.permute.xlu0 %433
    %v436 = vperm.slane %v434, 0
    %v438 = vsel %vm83, %v429, 0
    %440 = vmatpush.msra.mxu0 0.0
    %441 = vmatpush.msra.mxu0 0.0
    %442 = vmatpush.msra.mxu0 0.0
    %443 = vmatpush.msra.mxu0 0.0
    %444 = vmatpush.msra.mxu0 0.0
    %445 = vmatpush.msra.mxu0 0.0
    %446 = vmatpush.msra.mxu0 0.0
    %447 = vmatpush.msra.mxu0 0.0
    %448 = vmatpush.msra.mxu0 0.0
    %449 = vmatpush.msra.mxu0 0.0
    %450 = vmatpush.msra.mxu0 0.0
    %451 = vmatpush.msra.mxu0 0.0
    %452 = vmatpush.msra.mxu0 %v428
    %453 = vmatpush.msra.mxu0 %v427
    %454 = vmatpush.msra.mxu0 %v426
    %455 = vmatpush.msra.mxu0 %v425
    %456 = vmatmul.f32.gmra.mxu0 %v438
    %v457 = vpop.f32.mrf.mxu0
    %v458 = vadd.f32 %v436, %v457
    %459 = vdwg.mxu0
    %v460 = vmax.f32 %v458, 0.0
    %461 = vst [vmem:[#allocation6] sm:$0x1] %v460
    // Predicated region
    $region42: #{tpu_custom_call.1} parent=1 // pred_check
      _
    $region43: #{tpu_custom_call.1} parent=1 // pred_check_branch
      %463 = sbr.rel (0) target = $region45
    $region44: #{tpu_custom_call.1} parent=1 // pred_region
      %465 = vsyncadd [#allocation5], 0
      %s467 = sshll.u32 [#allocation6], 4
      %s468 = int_to_ptr.vmem [resolvable:$true] %s467
      %s469 = sshll.u32 %s9, 4
      %s470 = int_to_ptr.hbm [resolvable:$true] %s469
      %472 = dma.vmem_to_hbm [thread:$0]  %s468, 16, %s470, [#allocation5]
    $region45: #{tpu_custom_call.1} parent=1 // pred_fallthru
      _
    // Predicated region
    $region46: #{tpu_custom_call.1} parent=1 // pred_check
      _
    $region47: #{tpu_custom_call.1} parent=1 // pred_check_branch
      %474 = sbr.rel (0) target = $region49
    $region48: #{tpu_custom_call.1} parent=1 // pred_region
      %476 = dma.done [#allocation5], 16
    $region49: #{tpu_custom_call.1} parent=1 // pred_fallthru
      _
    %477 = vsyncpa [#allocation4], 1
    %478 = vsyncpa [#allocation5], 1

// kernel: tpu_custom_call.1
$region0: #{tpu_custom_call.1}
  #allocation0 [shape = 'u32[]', space=smem, size = 0x4, offset = 0x4, fixed_abs, tag = 'smem constant byte address 0x4 - core index']
  #allocation1 [shape = 'u32[72,128]{1,0:T(1,128)}', space=vmem, size = 0x9000, scoped, tag = 'internal scratch']
  #allocation2 [shape = 'f32[1,1]{1,0:T(1,128)S(1)}', space=vmem, size = 0x200, scoped, tag = 'scoped memory for tpu_custom_call.1']
  %s0 = inlined_call_operand.vmem [shape: f32[32,128], index: 0, kind: input, shape index: {}]
  %s1 = inlined_call_operand.hbm [shape: f32[32,32], index: 1, kind: input, shape index: {}]
  %s2 = inlined_call_operand.vmem [shape: f32[32,1], index: 2, kind: input, shape index: {}]
  %s3 = inlined_call_operand.vmem [shape: f32[2,32,32], index: 3, kind: input, shape index: {}]
  %s4 = inlined_call_operand.vmem [shape: f32[2,32,1], index: 4, kind: input, shape index: {}]
  %s5 = inlined_call_operand.vmem [shape: f32[2,32,32], index: 5, kind: input, shape index: {}]
  %s6 = inlined_call_operand.vmem [shape: f32[2,32,1], index: 6, kind: input, shape index: {}]
  %s7 = inlined_call_operand.vmem [shape: f32[1,32], index: 7, kind: input, shape index: {}]
  %s8 = inlined_call_operand.<no memory space> [shape: f32[1,1], index: 8, kind: input, shape index: {}]
  %s9 = inlined_call_operand.hbm [shape: f32[1,128], index: 9, kind: output, shape index: {}]
  %s10 = sld [smem:[#allocation0]]
  $region50: #{tpu_custom_call.1} parent=0
    _
  %s12 = ssub.s32 1, %s10
  %s13 = scalar_select 0, %s12, %s10
  %v14 = vstv %s8
  %15 = vst [vmem:[#allocation2] sm:$0x1] %v14
  $region1: #{tpu_custom_call.1} parent=0
    #allocation3 [shape = 'u8[16384]{0}', space=vmem, size = 0x4000, scoped, tag = 'input window, operand 1, single buffered']
    #allocation4 [shape = 's32[1]{0}', space=sflag, size = 0x4, scoped, tag = 'scoped memory for tpu_custom_call.1']
    #allocation5 [shape = 's32[1]{0}', space=sflag, size = 0x4, scoped, tag = 'scoped memory for tpu_custom_call.1']
    #allocation6 [shape = 'u8[512]{0}', space=vmem, size = 0x400, scoped, tag = 'output window, operand 0, single buffered']
    %16 = vsyncpa [#allocation4], 0
    %17 = vsyncpa [#allocation5], 0
    // Predicated region
    $region2: #{tpu_custom_call.1} parent=1 // pred_check
      _
    $region3: #{tpu_custom_call.1} parent=1 // pred_check_branch
      %19 = sbr.rel (0) target = $region5
    $region4: #{tpu_custom_call.1} parent=1 // pred_region
      _
    $region5: #{tpu_custom_call.1} parent=1 // pred_fallthru
      _
    // Predicated region
    $region6: #{tpu_custom_call.1} parent=1 // pred_check
      _
    $region7: #{tpu_custom_call.1} parent=1 // pred_check_branch
      %21 = sbr.rel (0) target = $region9
    $region8: #{tpu_custom_call.1} parent=1 // pred_region
      %23 = vsyncadd [#allocation4], 0
      %s24 = sshll.u32 %s1, 4
      %s25 = int_to_ptr.hbm [resolvable:$true] %s24
      %s26 = sshll.u32 [#allocation3], 4
      %s27 = int_to_ptr.vmem [resolvable:$true] %s26
      %32 = dma.hbm_to_vmem [thread:$0]  %s25, 512, %s27, [#allocation4], 128, 128, 8
    $region9: #{tpu_custom_call.1} parent=1 // pred_fallthru
      _
    // Predicated region
    $region10: #{tpu_custom_call.1} parent=1 // pred_check
      _
    $region11: #{tpu_custom_call.1} parent=1 // pred_check_branch
      %34 = sbr.rel (0) target = $region13
    $region12: #{tpu_custom_call.1} parent=1 // pred_region
      _
    $region13: #{tpu_custom_call.1} parent=1 // pred_fallthru
      _
    // Predicated region
    $region14: #{tpu_custom_call.1} parent=1 // pred_check
      _
    $region15: #{tpu_custom_call.1} parent=1 // pred_check_branch
      %36 = sbr.rel (0) target = $region17
    $region16: #{tpu_custom_call.1} parent=1 // pred_region
      _
    $region17: #{tpu_custom_call.1} parent=1 // pred_fallthru
      _
    // Predicated region
    $region18: #{tpu_custom_call.1} parent=1 // pred_check
      _
    $region19: #{tpu_custom_call.1} parent=1 // pred_check_branch
      %38 = sbr.rel (0) target = $region21
    $region20: #{tpu_custom_call.1} parent=1 // pred_region
      _
    $region21: #{tpu_custom_call.1} parent=1 // pred_fallthru
      _
    // Predicated region
    $region22: #{tpu_custom_call.1} parent=1 // pred_check
      _
    $region23: #{tpu_custom_call.1} parent=1 // pred_check_branch
      %40 = sbr.rel (0) target = $region25
    $region24: #{tpu_custom_call.1} parent=1 // pred_region
      _
    $region25: #{tpu_custom_call.1} parent=1 // pred_fallthru
      _
    // Predicated region
    $region26: #{tpu_custom_call.1} parent=1 // pred_check
      _
    $region27: #{tpu_custom_call.1} parent=1 // pred_check_branch
      %42 = sbr.rel (0) target = $region29
    $region28: #{tpu_custom_call.1} parent=1 // pred_region
      _
    $region29: #{tpu_custom_call.1} parent=1 // pred_fallthru
      _
    // Predicated region
    $region30: #{tpu_custom_call.1} parent=1 // pred_check
      _
    $region31: #{tpu_custom_call.1} parent=1 // pred_check_branch
      %44 = sbr.rel (0) target = $region33
    $region32: #{tpu_custom_call.1} parent=1 // pred_region
      _
    $region33: #{tpu_custom_call.1} parent=1 // pred_fallthru
      _
    // Predicated region
    $region34: #{tpu_custom_call.1} parent=1 // pred_check
      _
    $region35: #{tpu_custom_call.1} parent=1 // pred_check_branch
      %46 = sbr.rel (0) target = $region37
    $region36: #{tpu_custom_call.1} parent=1 // pred_region
      _
    $region37: #{tpu_custom_call.1} parent=1 // pred_fallthru
      _
    // Predicated region
    $region38: #{tpu_custom_call.1} parent=1 // pred_check
      _
    $region39: #{tpu_custom_call.1} parent=1 // pred_check_branch
      %48 = sbr.rel (0) target = $region41
    $region40: #{tpu_custom_call.1} parent=1 // pred_region
      %50 = dma.done [#allocation4], 512
    $region41: #{tpu_custom_call.1} parent=1 // pred_fallthru
      _
    %v51 = vld [vmem:[%s0] sm:$0xff]
    %v52 = vld [vmem:[%s0 + $0x8] sm:$0xff]
    %v53 = vld [vmem:[%s0 + $0x10] sm:$0xff]
    %v54 = vld [vmem:[%s0 + $0x18] sm:$0xff]
    %v55 = vld [vmem:[#allocation3] sm:$0xff]
    %v56 = vld [vmem:[#allocation3 + $0x8] sm:$0xff]
    %v57 = vld [vmem:[#allocation3 + $0x10] sm:$0xff]
    %v58 = vld [vmem:[#allocation3 + $0x18] sm:$0xff]
    %v59 = vld [vmem:[%s2] sm:$0xff]
    %v60 = vld [vmem:[%s2 + $0x8] sm:$0xff]
    %v61 = vld [vmem:[%s2 + $0x10] sm:$0xff]
    %v62 = vld [vmem:[%s2 + $0x18] sm:$0xff]
    %64 = vset.pattern.permute.xlu0 0
    %65 = vperm.xlu0 %64, %v59
    %v66 = vpop.permute.xlu0 %65
    %69 = vset.pattern.permute.xlu0 0
    %70 = vperm.xlu0 %69, %v60
    %v71 = vpop.permute.xlu0 %70
    %74 = vset.pattern.permute.xlu0 0
    %75 = vperm.xlu0 %74, %v61
    %v76 = vpop.permute.xlu0 %75
    %79 = vset.pattern.permute.xlu0 0
    %80 = vperm.xlu0 %79, %v62
    %v81 = vpop.permute.xlu0 %80
    %vm83 = vcmask 261120
    %v85 = vsel %vm83, %v55, 0
    %v88 = vsel %vm83, %v56, 0
    %v91 = vsel %vm83, %v57, 0
    %v94 = vsel %vm83, %v58, 0
    %96 = vmatpush.msra.mxu0 0.0
    %97 = vmatpush.msra.mxu0 0.0
    %98 = vmatpush.msra.mxu0 0.0
    %99 = vmatpush.msra.mxu0 0.0
    %100 = vmatpush.msra.mxu0 0.0
    %101 = vmatpush.msra.mxu0 0.0
    %102 = vmatpush.msra.mxu0 0.0
    %103 = vmatpush.msra.mxu0 0.0
    %104 = vmatpush.msra.mxu0 0.0
    %105 = vmatpush.msra.mxu0 0.0
    %106 = vmatpush.msra.mxu0 0.0
    %107 = vmatpush.msra.mxu0 0.0
    %108 = vmatpush.msra.mxu0 %v54
    %109 = vmatpush.msra.mxu0 %v53
    %110 = vmatpush.msra.mxu0 %v52
    %111 = vmatpush.msra.mxu0 %v51
    %112 = vmatmul.f32.gmra.mxu0 %v85
    %v113 = vpop.f32.mrf.mxu0
    %v114 = vadd.f32 %v66, %v113
    %115 = vmatmul.f32.gmra.mxu0 %v88
    %v116 = vpop.f32.mrf.mxu0
    %v117 = vadd.f32 %v71, %v116
    %118 = vmatmul.f32.gmra.mxu0 %v91
    %v119 = vpop.f32.mrf.mxu0
    %v120 = vadd.f32 %v76, %v119
    %121 = vmatmul.f32.gmra.mxu0 %v94
    %v122 = vpop.f32.mrf.mxu0
    %v123 = vadd.f32 %v81, %v122
    %124 = vdwg.mxu0
    %v125 = vld [vmem:[%s3] sm:$0xff]
    %v126 = vld [vmem:[%s3 + $0x8] sm:$0xff]
    %v127 = vld [vmem:[%s3 + $0x10] sm:$0xff]
    %v128 = vld [vmem:[%s3 + $0x18] sm:$0xff]
    %v129 = vld [vmem:[%s4] sm:$0xff]
    %v130 = vld [vmem:[%s4 + $0x8] sm:$0xff]
    %v131 = vld [vmem:[%s4 + $0x10] sm:$0xff]
    %v132 = vld [vmem:[%s4 + $0x18] sm:$0xff]
    %134 = vset.pattern.permute.xlu0 0
    %135 = vperm.xlu0 %134, %v129
    %v136 = vpop.permute.xlu0 %135
    %139 = vset.pattern.permute.xlu0 0
    %140 = vperm.xlu0 %139, %v130
    %v141 = vpop.permute.xlu0 %140
    %144 = vset.pattern.permute.xlu0 0
    %145 = vperm.xlu0 %144, %v131
    %v146 = vpop.permute.xlu0 %145
    %149 = vset.pattern.permute.xlu0 0
    %150 = vperm.xlu0 %149, %v132
    %v151 = vpop.permute.xlu0 %150
    %v154 = vsel %vm83, %v125, 0
    %v157 = vsel %vm83, %v126, 0
    %v160 = vsel %vm83, %v127, 0
    %v163 = vsel %vm83, %v128, 0
    %165 = vmatpush.msra.mxu0 0.0
    %166 = vmatpush.msra.mxu0 0.0
    %167 = vmatpush.msra.mxu0 0.0
    %168 = vmatpush.msra.mxu0 0.0
    %169 = vmatpush.msra.mxu0 0.0
    %170 = vmatpush.msra.mxu0 0.0
    %171 = vmatpush.msra.mxu0 0.0
    %172 = vmatpush.msra.mxu0 0.0
    %173 = vmatpush.msra.mxu0 0.0
    %174 = vmatpush.msra.mxu0 0.0
    %175 = vmatpush.msra.mxu0 0.0
    %176 = vmatpush.msra.mxu0 0.0
    %177 = vmatpush.msra.mxu0 %v123
    %178 = vmatpush.msra.mxu0 %v120
    %179 = vmatpush.msra.mxu0 %v117
    %180 = vmatpush.msra.mxu0 %v114
    %181 = vmatmul.f32.gmra.mxu0 %v154
    %v182 = vpop.f32.mrf.mxu0
    %v183 = vadd.f32 %v136, %v182
    %184 = vmatmul.f32.gmra.mxu0 %v157
    %v185 = vpop.f32.mrf.mxu0
    %v186 = vadd.f32 %v141, %v185
    %187 = vmatmul.f32.gmra.mxu0 %v160
    %v188 = vpop.f32.mrf.mxu0
    %v189 = vadd.f32 %v146, %v188
    %190 = vmatmul.f32.gmra.mxu0 %v163
    %v191 = vpop.f32.mrf.mxu0
    %v192 = vadd.f32 %v151, %v191
    %193 = vdwg.mxu0
    %v194 = vmax.f32 %v183, 0.0
    %v195 = vmax.f32 %v186, 0.0
    %v196 = vmax.f32 %v189, 0.0
    %v197 = vmax.f32 %v192, 0.0
    %v198 = vld [vmem:[%s5] sm:$0xff]
    %v199 = vld [vmem:[%s5 + $0x8] sm:$0xff]
    %v200 = vld [vmem:[%s5 + $0x10] sm:$0xff]
    %v201 = vld [vmem:[%s5 + $0x18] sm:$0xff]
    %v202 = vld [vmem:[%s6] sm:$0xff]
    %v203 = vld [vmem:[%s6 + $0x8] sm:$0xff]
    %v204 = vld [vmem:[%s6 + $0x10] sm:$0xff]
    %v205 = vld [vmem:[%s6 + $0x18] sm:$0xff]
    %207 = vset.pattern.permute.xlu0 0
    %208 = vperm.xlu0 %207, %v202
    %v209 = vpop.permute.xlu0 %208
    %212 = vset.pattern.permute.xlu0 0
    %213 = vperm.xlu0 %212, %v203
    %v214 = vpop.permute.xlu0 %213
    %217 = vset.pattern.permute.xlu0 0
    %218 = vperm.xlu0 %217, %v204
    %v219 = vpop.permute.xlu0 %218
    %222 = vset.pattern.permute.xlu0 0
    %223 = vperm.xlu0 %222, %v205
    %v224 = vpop.permute.xlu0 %223
    %v227 = vsel %vm83, %v198, 0
    %v230 = vsel %vm83, %v199, 0
    %v233 = vsel %vm83, %v200, 0
    %v236 = vsel %vm83, %v201, 0
    %238 = vmatpush.msra.mxu0 0.0
    %239 = vmatpush.msra.mxu0 0.0
    %240 = vmatpush.msra.mxu0 0.0
    %241 = vmatpush.msra.mxu0 0.0
    %242 = vmatpush.msra.mxu0 0.0
    %243 = vmatpush.msra.mxu0 0.0
    %244 = vmatpush.msra.mxu0 0.0
    %245 = vmatpush.msra.mxu0 0.0
    %246 = vmatpush.msra.mxu0 0.0
    %247 = vmatpush.msra.mxu0 0.0
    %248 = vmatpush.msra.mxu0 0.0
    %249 = vmatpush.msra.mxu0 0.0
    %250 = vmatpush.msra.mxu0 %v197
    %251 = vmatpush.msra.mxu0 %v196
    %252 = vmatpush.msra.mxu0 %v195
    %253 = vmatpush.msra.mxu0 %v194
    %254 = vmatmul.f32.gmra.mxu0 %v227
    %v255 = vpop.f32.mrf.mxu0
    %v256 = vadd.f32 %v209, %v255
    %257 = vmatmul.f32.gmra.mxu0 %v230
    %v258 = vpop.f32.mrf.mxu0
    %v259 = vadd.f32 %v214, %v258
    %260 = vmatmul.f32.gmra.mxu0 %v233
    %v261 = vpop.f32.mrf.mxu0
    %v262 = vadd.f32 %v219, %v261
    %263 = vmatmul.f32.gmra.mxu0 %v236
    %v264 = vpop.f32.mrf.mxu0
    %v265 = vadd.f32 %v224, %v264
    %266 = vdwg.mxu0
    %v267 = vadd.f32 %v256, %v114
    %v268 = vadd.f32 %v259, %v117
    %v269 = vadd.f32 %v262, %v120
    %v270 = vadd.f32 %v265, %v123
    %v271 = vmax.f32 %v267, 0.0
    %v272 = vmax.f32 %v268, 0.0
    %v273 = vmax.f32 %v269, 0.0
    %v274 = vmax.f32 %v270, 0.0
    %s275 = scalar_lea.vmem %s3, 32
    %v276 = vld [vmem:[%s275] sm:$0xff]
    %v277 = vld [vmem:[%s275 + $0x8] sm:$0xff]
    %v278 = vld [vmem:[%s275 + $0x10] sm:$0xff]
    %v279 = vld [vmem:[%s275 + $0x18] sm:$0xff]
    %s280 = scalar_lea.vmem %s4, 32
    %v281 = vld [vmem:[%s280] sm:$0xff]
    %v282 = vld [vmem:[%s280 + $0x8] sm:$0xff]
    %v283 = vld [vmem:[%s280 + $0x10] sm:$0xff]
    %v284 = vld [vmem:[%s280 + $0x18] sm:$0xff]
    %286 = vset.pattern.permute.xlu0 0
    %287 = vperm.xlu0 %286, %v281
    %v288 = vpop.permute.xlu0 %287
    %291 = vset.pattern.permute.xlu0 0
    %292 = vperm.xlu0 %291, %v282
    %v293 = vpop.permute.xlu0 %292
    %296 = vset.pattern.permute.xlu0 0
    %297 = vperm.xlu0 %296, %v283
    %v298 = vpop.permute.xlu0 %297
    %301 = vset.pattern.permute.xlu0 0
    %302 = vperm.xlu0 %301, %v284
    %v303 = vpop.permute.xlu0 %302
    %v306 = vsel %vm83, %v276, 0
    %v309 = vsel %vm83, %v277, 0
    %v312 = vsel %vm83, %v278, 0
    %v315 = vsel %vm83, %v279, 0
    %317 = vmatpush.msra.mxu0 0.0
    %318 = vmatpush.msra.mxu0 0.0
    %319 = vmatpush.msra.mxu0 0.0
    %320 = vmatpush.msra.mxu0 0.0
    %321 = vmatpush.msra.mxu0 0.0
    %322 = vmatpush.msra.mxu0 0.0
    %323 = vmatpush.msra.mxu0 0.0
    %324 = vmatpush.msra.mxu0 0.0
    %325 = vmatpush.msra.mxu0 0.0
    %326 = vmatpush.msra.mxu0 0.0
    %327 = vmatpush.msra.mxu0 0.0
    %328 = vmatpush.msra.mxu0 0.0
    %329 = vmatpush.msra.mxu0 %v274
    %330 = vmatpush.msra.mxu0 %v273
    %331 = vmatpush.msra.mxu0 %v272
    %332 = vmatpush.msra.mxu0 %v271
    %333 = vmatmul.f32.gmra.mxu0 %v306
    %v334 = vpop.f32.mrf.mxu0
    %v335 = vadd.f32 %v288, %v334
    %336 = vmatmul.f32.gmra.mxu0 %v309
    %v337 = vpop.f32.mrf.mxu0
    %v338 = vadd.f32 %v293, %v337
    %339 = vmatmul.f32.gmra.mxu0 %v312
    %v340 = vpop.f32.mrf.mxu0
    %v341 = vadd.f32 %v298, %v340
    %342 = vmatmul.f32.gmra.mxu0 %v315
    %v343 = vpop.f32.mrf.mxu0
    %v344 = vadd.f32 %v303, %v343
    %345 = vdwg.mxu0
    %v346 = vmax.f32 %v335, 0.0
    %v347 = vmax.f32 %v338, 0.0
    %v348 = vmax.f32 %v341, 0.0
    %v349 = vmax.f32 %v344, 0.0
    %s350 = scalar_lea.vmem %s5, 32
    %v351 = vld [vmem:[%s350] sm:$0xff]
    %v352 = vld [vmem:[%s350 + $0x8] sm:$0xff]
    %v353 = vld [vmem:[%s350 + $0x10] sm:$0xff]
    %v354 = vld [vmem:[%s350 + $0x18] sm:$0xff]
    %s355 = scalar_lea.vmem %s6, 32
    %v356 = vld [vmem:[%s355] sm:$0xff]
    %v357 = vld [vmem:[%s355 + $0x8] sm:$0xff]
    %v358 = vld [vmem:[%s355 + $0x10] sm:$0xff]
    %v359 = vld [vmem:[%s355 + $0x18] sm:$0xff]
    %361 = vset.pattern.permute.xlu0 0
    %362 = vperm.xlu0 %361, %v356
    %v363 = vpop.permute.xlu0 %362
    %366 = vset.pattern.permute.xlu0 0
    %367 = vperm.xlu0 %366, %v357
    %v368 = vpop.permute.xlu0 %367
    %371 = vset.pattern.permute.xlu0 0
    %372 = vperm.xlu0 %371, %v358
    %v373 = vpop.permute.xlu0 %372
    %376 = vset.pattern.permute.xlu0 0
    %377 = vperm.xlu0 %376, %v359
    %v378 = vpop.permute.xlu0 %377
    %v381 = vsel %vm83, %v351, 0
    %v384 = vsel %vm83, %v352, 0
    %v387 = vsel %vm83, %v353, 0
    %v390 = vsel %vm83, %v354, 0
    %392 = vmatpush.msra.mxu0 0.0
    %393 = vmatpush.msra.mxu0 0.0
    %394 = vmatpush.msra.mxu0 0.0
    %395 = vmatpush.msra.mxu0 0.0
    %396 = vmatpush.msra.mxu0 0.0
    %397 = vmatpush.msra.mxu0 0.0
    %398 = vmatpush.msra.mxu0 0.0
    %399 = vmatpush.msra.mxu0 0.0
    %400 = vmatpush.msra.mxu0 0.0
    %401 = vmatpush.msra.mxu0 0.0
    %402 = vmatpush.msra.mxu0 0.0
    %403 = vmatpush.msra.mxu0 0.0
    %404 = vmatpush.msra.mxu0 %v349
    %405 = vmatpush.msra.mxu0 %v348
    %406 = vmatpush.msra.mxu0 %v347
    %407 = vmatpush.msra.mxu0 %v346
    %408 = vmatmul.f32.gmra.mxu0 %v381
    %v409 = vpop.f32.mrf.mxu0
    %v410 = vadd.f32 %v363, %v409
    %411 = vmatmul.f32.gmra.mxu0 %v384
    %v412 = vpop.f32.mrf.mxu0
    %v413 = vadd.f32 %v368, %v412
    %414 = vmatmul.f32.gmra.mxu0 %v387
    %v415 = vpop.f32.mrf.mxu0
    %v416 = vadd.f32 %v373, %v415
    %417 = vmatmul.f32.gmra.mxu0 %v390
    %v418 = vpop.f32.mrf.mxu0
    %v419 = vadd.f32 %v378, %v418
    %420 = vdwg.mxu0
    %v421 = vadd.f32 %v410, %v271
    %v422 = vadd.f32 %v413, %v272
    %v423 = vadd.f32 %v416, %v273
    %v424 = vadd.f32 %v419, %v274
    %v425 = vmax.f32 %v421, 0.0
    %v426 = vmax.f32 %v422, 0.0
    %v427 = vmax.f32 %v423, 0.0
    %v428 = vmax.f32 %v424, 0.0
    %v429 = vld [vmem:[%s7] sm:$0x1]
    %v430 = vld [vmem:[#allocation2] sm:$0x1]
    %432 = vset.pattern.permute.xlu0 0
    %433 = vperm.xlu0 %432, %v430
    %v434 = vpop.permute.xlu0 %433
    %v436 = vperm.slane %v434, 0
    %v438 = vsel %vm83, %v429, 0
    %440 = vmatpush.msra.mxu0 0.0
    %441 = vmatpush.msra.mxu0 0.0
    %442 = vmatpush.msra.mxu0 0.0
    %443 = vmatpush.msra.mxu0 0.0
    %444 = vmatpush.msra.mxu0 0.0
    %445 = vmatpush.msra.mxu0 0.0
    %446 = vmatpush.msra.mxu0 0.0
    %447 = vmatpush.msra.mxu0 0.0
    %448 = vmatpush.msra.mxu0 0.0
    %449 = vmatpush.msra.mxu0 0.0
    %450 = vmatpush.msra.mxu0 0.0
    %451 = vmatpush.msra.mxu0 0.0
    %452 = vmatpush.msra.mxu0 %v428
    %453 = vmatpush.msra.mxu0 %v427
    %454 = vmatpush.msra.mxu0 %v426
    %455 = vmatpush.msra.mxu0 %v425
    %456 = vmatmul.f32.gmra.mxu0 %v438
    %v457 = vpop.f32.mrf.mxu0
    %v458 = vadd.f32 %v436, %v457
    %459 = vdwg.mxu0
    %v460 = vmax.f32 %v458, 0.0
    %461 = vst [vmem:[#allocation6] sm:$0x1] %v460
    // Predicated region
    $region42: #{tpu_custom_call.1} parent=1 // pred_check
      _
    $region43: #{tpu_custom_call.1} parent=1 // pred_check_branch
      %463 = sbr.rel (0) target = $region45
    $region44: #{tpu_custom_call.1} parent=1 // pred_region
      %465 = vsyncadd [#allocation5], 0
      %s467 = sshll.u32 [#allocation6], 4
      %s468 = int_to_ptr.vmem [resolvable:$true] %s467
      %s469 = sshll.u32 %s9, 4
      %s470 = int_to_ptr.hbm [resolvable:$true] %s469
      %472 = dma.vmem_to_hbm [thread:$0]  %s468, 16, %s470, [#allocation5]
    $region45: #{tpu_custom_call.1} parent=1 // pred_fallthru
      _
    // Predicated region
    $region46: #{tpu_custom_call.1} parent=1 // pred_check
      _
    $region47: #{tpu_custom_call.1} parent=1 // pred_check_branch
      %474 = sbr.rel (0) target = $region49
    $region48: #{tpu_custom_call.1} parent=1 // pred_region
      %476 = dma.done [#allocation5], 16
    $region49: #{tpu_custom_call.1} parent=1 // pred_fallthru
      _
    %477 = vsyncpa [#allocation4], 1
    %478 = vsyncpa [#allocation5], 1

</llo_original>
